<compile_context>
chip_gen: v7x
topology: tpu7x:2x2x1
jax: 0.10.0
libtpu: 0.0.40
codegen_flags: <defaults>
</compile_context>

<pallas_src>
import functools

import jax
import jax.numpy as jnp
from jax import lax
from jax.experimental import pallas as pl
from jax.experimental.pallas import tpu as pltpu

_EPS = 1e-12  # matches torch.nn.functional.normalize default eps


def _round_up(x, m):
    return (x + m - 1) // m * m


# --------------------------------------------------------------------------
# Per-episode fused math (runs on values already resident in VMEM/vregs)
# --------------------------------------------------------------------------
def _episode_body(x, labels, center, *, ns, ns_pad, nq, n_classes,
                  use_softmax, temperature, mm):
    f32 = jnp.float32
    k = n_classes
    n_tot = ns_pad + nq
    dn_samples = (((1,), (0,)), ((), ()))   # (K, N) . (N, D) -> (K, D)
    dn_features = (((1,), (1,)), ((), ()))  # (A, D) . (B, D) -> (A, B)

    xc = x - center                                           # centered [sup ; qry]

    # average_support_query_shift = mean(centered sup) - mean(centered qry).
    # The centering terms cancel, and the zero-padded support rows drop out
    # because we divide by the true ns (a compile-time constant).
    shift = (jnp.sum(x[:ns_pad, :], axis=0, keepdims=True) * (1.0 / ns)
             - jnp.sum(x[ns_pad:, :], axis=0, keepdims=True) * (1.0 / nq))  # (1, Dp)
    row_iota = lax.broadcasted_iota(jnp.int32, (n_tot, 1), 0)
    is_qry_row = (row_iota >= ns_pad).astype(f32)             # (N_tot, 1)
    stacked = xc + is_qry_row * shift                         # [sup_c ; qry_c + shift]

    # One-hot support labels in (K, N_tot) orientation. Padded support columns
    # and all query columns carry label -1 -> all-zero one-hot -> they drop out
    # of every class-sum below.
    class_iota = lax.broadcasted_iota(jnp.int32, (k, n_tot), 0)
    oh_kn = (labels == class_iota).astype(f32)                # (K, N_tot)
    counts = jnp.sum(oh_kn, axis=1, keepdims=True)            # (K, 1) VPU sum (off MXU)
    inv_counts = pl.reciprocal(counts)                        # exact

    # Initial prototypes = per-class mean of centered support features.  [MXU 1]
    proto = lax.dot_general(oh_kn.astype(mm), stacked.astype(mm), dn_samples,
                            preferred_element_type=f32) * inv_counts        # (K, Dp)

    def l2norm(m):
        sq = jnp.sum(m * m, axis=1, keepdims=True)
        return m * lax.rsqrt(jnp.maximum(sq, _EPS * _EPS))    # rsqrt -> EUP slot

    proto_n = l2norm(proto)

    # Fused cosine-similarity logits for [support ; shifted query].  [MXU 2]
    logits = jnp.exp(lax.dot_general(proto_n.astype(mm), l2norm(stacked).astype(mm),
                                     dn_features, preferred_element_type=f32))  # (K, N_tot)

    # one_hot(argmax(query_logits)) with first-index tie semantics, computed in
    # the same (K, N) orientation (sublane-axis reductions).
    # NOTE: non-finite logits (empty class in an episode) yield an all-zero
    # prediction column, same failure mode as the torch reference (NaN protos).
    row_k = class_iota.astype(f32)
    lmax = jnp.max(logits, axis=0, keepdims=True)             # (1, N_tot)
    first = jnp.min(jnp.where(logits >= lmax, row_k, float(k)),
                    axis=0, keepdims=True)                    # (1, N_tot)
    oh_pred = (row_k == first).astype(f32)                    # (K, N_tot)

    # Label-propagation re-weighting: support columns use the label one-hot,
    # query columns the prediction one-hot; one exact reciprocal, reused.
    # (The torch code multiplies by the one-hot a second time; it is a 0/1
    # mask already carried by w, so the extra multiply is dropped.)
    col_iota = lax.broadcasted_iota(jnp.int32, (1, n_tot), 1)
    w = jnp.where(col_iota >= ns_pad, oh_pred, oh_kn) * logits       # (K, N_tot)
    w_rw = w * pl.reciprocal(jnp.sum(w, axis=1, keepdims=True))      # (K, N_tot)

    # Rectified prototypes: one MXU dot over the whole stacked sample axis. [MXU 3]
    new_proto = lax.dot_general(w_rw.astype(mm), stacked.astype(mm), dn_samples,
                                preferred_element_type=f32)          # (K, Dp)

    # scores = -cdist(centered *unshifted* query features, new prototypes)
    qry_c = xc[ns_pad:, :]                                    # (Nq, Dp)
    q_sq = jnp.sum(qry_c * qry_c, axis=1, keepdims=True)      # (Nq, 1)
    # Kept as a 1-wide MXU dot: it yields p_sq directly in the (1, K) lane
    # orientation; a VPU sum would need a (K,1)->(1,K) relayout.        [MXU 4]
    ones_1d = jnp.ones((1, new_proto.shape[1]), f32)
    p_sq = lax.dot_general(ones_1d, new_proto * new_proto, dn_features,
                           preferred_element_type=f32)               # (1, K)
    cross = lax.dot_general(qry_c.astype(mm), new_proto.astype(mm), dn_features,
                            preferred_element_type=f32)              # (Nq, K)  [MXU 5]
    d2 = jnp.maximum(q_sq + p_sq - 2.0 * cross, 0.0)
    scores = -jnp.sqrt(d2)

    if use_softmax:
        z = temperature * scores
        z = z - jnp.max(z, axis=-1, keepdims=True)
        ez = jnp.exp(z)
        scores = ez * pl.reciprocal(jnp.sum(ez, axis=-1, keepdims=True))
    return scores, new_proto


# --------------------------------------------------------------------------
# Kernel: E episodes per grid step (static unroll), shared centering row
# --------------------------------------------------------------------------
def _s2p_packed_kernel(center_ref, labels_ref, feats_ref, scores_ref, proto_ref,
                       *, episodes_per_step, ns, ns_pad, nq, n_classes,
                       use_softmax, temperature, matmul_dtype):
    center = center_ref[...].astype(jnp.float32)              # (1, Dp), shared
    for e in range(episodes_per_step):                        # static unroll
        scores, new_proto = _episode_body(
            feats_ref[e].astype(jnp.float32), labels_ref[e], center,
            ns=ns, ns_pad=ns_pad, nq=nq, n_classes=n_classes,
            use_softmax=use_softmax, temperature=temperature, mm=matmul_dtype)
        scores_ref[e] = scores
        proto_ref[e] = new_proto


# --------------------------------------------------------------------------
# Generation-aware episode packing / VMEM sizing
# --------------------------------------------------------------------------
def _choose_episode_packing(b, per_episode_bytes):
    try:
        vmem_cap = int(pltpu.get_tpu_info().vmem_capacity_bytes)
    except Exception:  # CPU / emulation / older jax: assume the smallest (v7x)
        vmem_cap = 64 * 1024 * 1024
    budget = vmem_cap // 4                       # block budget: ~1/4 of physical VMEM
    e = max(1, budget // max(1, 2 * per_episode_bytes))   # 2x: double-buffered pipeline
    e = min(e, 8)                                # keep the unrolled kernel body modest
    if b >= 2:
        e = max(1, min(e, b // 2))               # grid length >= 2 -> both v7x TCs get work
    else:
        e = 1
    vmem_limit = int(min(vmem_cap // 2, 64 * 1024 * 1024))
    return e, vmem_limit


# --------------------------------------------------------------------------
# Batched-episode entry point: one pallas_call, "parallel" grid over packs
# --------------------------------------------------------------------------
def s2p_forward_batched(support_features, support_labels, query_features,
                        centering=None, *, n_classes, use_softmax=False,
                        temperature=1.0, matmul_dtype=jnp.float32):
    sup = jnp.asarray(support_features, jnp.float32)
    qry = jnp.asarray(query_features, jnp.float32)
    lbl = jnp.asarray(support_labels, jnp.int32)
    b, ns, d = sup.shape
    nq = qry.shape[1]
    k = n_classes

    ns_pad = _round_up(max(ns, 8), 8)            # sublane-aligned support/query split
    d_pad = _round_up(max(d, 128), 128)          # lane-dense feature dim
    n_tot = ns_pad + nq

    # Stack [support ; query] on the sample axis; zero feature/row padding is an
    # exact no-op for every downstream reduction (zero columns, -1 labels).
    sup_p = jnp.pad(sup, ((0, 0), (0, ns_pad - ns), (0, d_pad - d)))
    qry_p = jnp.pad(qry, ((0, 0), (0, 0), (0, d_pad - d)))
    feats = jnp.concatenate([sup_p, qry_p], axis=1)           # (B, N_tot, Dp)

    # Lane-major labels over the whole stacked sample axis; padded support rows
    # and all query rows get label -1 (never matches a class).
    lbl_full = jnp.full((b, 1, n_tot), -1, jnp.int32)
    lbl_full = lbl_full.at[:, 0, :ns].set(lbl)

    if centering is None:
        center = jnp.zeros((1, d_pad), jnp.float32)
    else:
        c = jnp.broadcast_to(jnp.asarray(centering, jnp.float32), (1, d))
        center = jnp.pad(c, ((0, 0), (0, d_pad - d)))

    per_ep = 4 * (n_tot * d_pad + n_tot + nq * k + k * d_pad)
    e, vmem_limit = _choose_episode_packing(b, per_ep)
    b_pad = _round_up(b, e)
    if b_pad != b:  # replicate the last episode (keeps all class counts > 0)
        pad = b_pad - b
        feats = jnp.pad(feats, ((0, pad), (0, 0), (0, 0)), mode="edge")
        lbl_full = jnp.pad(lbl_full, ((0, pad), (0, 0), (0, 0)), mode="edge")

    kernel = functools.partial(
        _s2p_packed_kernel, episodes_per_step=e, ns=ns, ns_pad=ns_pad, nq=nq,
        n_classes=k, use_softmax=use_softmax, temperature=temperature,
        matmul_dtype=matmul_dtype)

    # TODO(synk): if profiling on v5e still shows exposed DMA after packing,
    # add pipeline_mode=pl.Buffered(3) on the feature BlockSpec.
    scores, protos = pl.pallas_call(
        kernel,
        out_shape=(jax.ShapeDtypeStruct((b_pad, nq, k), jnp.float32),
                   jax.ShapeDtypeStruct((b_pad, k, d_pad), jnp.float32)),
        grid=(b_pad // e,),
        in_specs=[
            pl.BlockSpec((1, d_pad), lambda g: (0, 0)),              # shared centering row
            pl.BlockSpec((e, 1, n_tot), lambda g: (g, 0, 0)),        # lane-major labels
            pl.BlockSpec((e, n_tot, d_pad), lambda g: (g, 0, 0)),    # stacked features
        ],
        out_specs=(pl.BlockSpec((e, nq, k), lambda g: (g, 0, 0)),
                   pl.BlockSpec((e, k, d_pad), lambda g: (g, 0, 0))),
        compiler_params=pltpu.CompilerParams(
            dimension_semantics=("parallel",),
            vmem_limit_bytes=vmem_limit),
    )(center, lbl_full, feats)

    return scores[:b], protos[:b, :, :d]


def s2p_forward_single(support_features, support_labels, query_features,
                       centering=None, *, n_classes, use_softmax=False,
                       temperature=1.0, matmul_dtype=jnp.float32):
    scores, protos = s2p_forward_batched(
        jnp.asarray(support_features)[None],
        jnp.asarray(support_labels, jnp.int32)[None],
        jnp.asarray(query_features)[None],
        centering, n_classes=n_classes, use_softmax=use_softmax,
        temperature=temperature, matmul_dtype=matmul_dtype)
    return scores[0], protos[0]


# --------------------------------------------------------------------------
# Thin JAX wrapper mirroring the PyTorch module's stateful API
# --------------------------------------------------------------------------
class S2P:
    def __init__(self, use_softmax=False, feature_centering=None,
                 feature_normalization=None):
        # backbone defaults to nn.Identity -> no conv/backbone weights.
        self.use_softmax = use_softmax
        self.feature_centering = feature_centering
        self.feature_normalization = feature_normalization
        self.prototypes = None
        self.support_features = None
        self.support_labels = None
        self.n_classes = None
        self._support_store = None
        self._center = None

    def _center_row(self, d):
        c = (jnp.float32(0.0) if self.feature_centering is None
             else jnp.asarray(self.feature_centering, jnp.float32))
        return jnp.broadcast_to(c, (1, d)).astype(jnp.float32)

    def _p_normalize(self, feats):
        p = self.feature_normalization
        norm = jnp.sum(jnp.abs(feats) ** p, axis=1, keepdims=True) ** (1.0 / p)
        return feats / jnp.maximum(norm, _EPS)

    def process_support_set(self, support_images, support_labels):
        feats = jnp.asarray(support_images, jnp.float32)
        if feats.ndim != 2:
            raise ValueError("Illegal backbone or feature shape. Expected output "
                             "for an image is a 1-dim tensor.")
        self.support_labels = jnp.asarray(support_labels, jnp.int32)
        self.n_classes = int(jnp.max(self.support_labels)) + 1
        d = feats.shape[1]
        if self.feature_normalization is None:
            # Default path: raw features + centering row go straight into the
            # fused kernel (centering happens in VMEM).
            self._center = self._center_row(d)
            self._support_store = feats
        else:
            # TODO(synk): general p-norm feature_normalization is applied in
            # plain JAX here rather than fused into the kernel.
            self._center = jnp.zeros((1, d), jnp.float32)
            self._support_store = self._p_normalize(feats - self._center_row(d))
        centered = self._support_store - self._center
        self.support_features = centered
        # Initial prototypes (class means) for API parity; the fused kernel
        # recomputes them in VMEM, so this tiny op is off the forward hot path.
        oh = jax.nn.one_hot(self.support_labels, self.n_classes, dtype=jnp.float32)
        self.prototypes = (oh.T @ centered) / oh.sum(0)[:, None]

    def forward(self, query_images):
        q = jnp.asarray(query_images, jnp.float32)
        if q.ndim != 2:
            raise ValueError("Illegal backbone or feature shape. Expected output "
                             "for an image is a 1-dim tensor.")
        if self.feature_normalization is None:
            q_store = q
        else:
            q_store = self._p_normalize(q - self._center_row(q.shape[1]))
        scores, new_prototypes = s2p_forward_single(
            self._support_store, self.support_labels, q_store, self._center,
            n_classes=self.n_classes, use_softmax=self.use_softmax)
        self.prototypes = new_prototypes  # matches the module's stateful update
        return scores

    __call__ = forward

    @staticmethod
    def is_transductive():
        return False


# --------------------------------------------------------------------------
# Pure-JAX reference (PyTorch semantics) for correctness checks
# --------------------------------------------------------------------------
def _reference(sup, labels, qry, n_classes):
    oh_sup = jax.nn.one_hot(labels, n_classes, dtype=jnp.float32)
    proto = (oh_sup.T @ sup) / oh_sup.sum(0)[:, None]

    def l2norm(x):
        return x / jnp.maximum(jnp.linalg.norm(x, axis=1, keepdims=True), _EPS)

    shift = sup.mean(0, keepdims=True) - qry.mean(0, keepdims=True)
    qry_s = qry + shift
    sup_logits = jnp.exp(l2norm(sup) @ l2norm(proto).T)
    qry_logits = jnp.exp(l2norm(qry_s) @ l2norm(proto).T)
    oh_q = jax.nn.one_hot(jnp.argmax(qry_logits, -1), n_classes, dtype=jnp.float32)
    norm = ((oh_sup * sup_logits).sum(0) + (oh_q * qry_logits).sum(0))[None, :]
    sup_rw = oh_sup * sup_logits / norm
    qry_rw = oh_q * qry_logits / norm
    new_p = (sup_rw * oh_sup).T @ sup + (qry_rw * oh_q).T @ qry_s
    d2 = (jnp.sum(qry ** 2, 1)[:, None] + jnp.sum(new_p ** 2, 1)[None, :]
          - 2.0 * qry @ new_p.T)
    return -jnp.sqrt(jnp.maximum(d2, 0.0)), new_p


if __name__ == "__main__":
    key = jax.random.PRNGKey(0)
    n_classes, n_shot, n_query, feat_dim, n_episodes = 5, 5, 15, 64, 4
    n_support = n_classes * n_shot

    keys = jax.random.split(key, 2 * n_episodes)
    sup_batch = jnp.stack([
        jax.random.normal(keys[2 * e], (n_support, feat_dim), jnp.float32)
        for e in range(n_episodes)])
    qry_batch = jnp.stack([
        jax.random.normal(keys[2 * e + 1], (n_query, feat_dim), jnp.float32)
        for e in range(n_episodes)])
    labels = jnp.repeat(jnp.arange(n_classes, dtype=jnp.int32), n_shot)
    labels_b = jnp.broadcast_to(labels, (n_episodes, n_support))

    # ---- stateful module API (single episode routed through the batched kernel)
    model = S2P(use_softmax=False)
    model.process_support_set(sup_batch[0], labels)
    scores0 = jax.block_until_ready(model(qry_batch[0]))
    ref_s0, ref_p0 = _reference(sup_batch[0], labels, qry_batch[0], n_classes)
    assert jnp.allclose(scores0, ref_s0, atol=1e-3, rtol=1e-3), (
        float(jnp.max(jnp.abs(scores0 - ref_s0))))
    assert jnp.allclose(model.prototypes, ref_p0, atol=1e-3, rtol=1e-3), (
        float(jnp.max(jnp.abs(model.prototypes - ref_p0))))

    # ---- use_softmax head (softmax_if_specified semantics) ----
    model_sm = S2P(use_softmax=True)
    model_sm.process_support_set(sup_batch[0], labels)
    probs0 = jax.block_until_ready(model_sm(qry_batch[0]))
    assert jnp.allclose(probs0, jax.nn.softmax(ref_s0, axis=-1),
                        atol=1e-3, rtol=1e-3), (
        float(jnp.max(jnp.abs(probs0 - jax.nn.softmax(ref_s0, axis=-1)))))

    # ---- batched episodes: one pallas_call, E episodes per parallel grid step
    scores_b, protos_b = s2p_forward_batched(
        sup_batch, labels_b, qry_batch, None, n_classes=n_classes)
    scores_b = jax.block_until_ready(scores_b)
    for e in range(n_episodes):
        ref_s, ref_p = _reference(sup_batch[e], labels, qry_batch[e], n_classes)
        assert jnp.allclose(scores_b[e], ref_s, atol=1e-3, rtol=1e-3), (
            e, float(jnp.max(jnp.abs(scores_b[e] - ref_s))))
        assert jnp.allclose(protos_b[e], ref_p, atol=1e-3, rtol=1e-3), (
            e, float(jnp.max(jnp.abs(protos_b[e] - ref_p))))

    # ---- bf16 MXU-input path (f32 accumulation); loose, robust check ----
    scores_bf, _ = s2p_forward_batched(
        sup_batch, labels_b, qry_batch, None, n_classes=n_classes,
        matmul_dtype=jnp.bfloat16)
    scores_bf = jax.block_until_ready(scores_bf)
    assert bool(jnp.all(jnp.isfinite(scores_bf)))
    assert float(jnp.mean(jnp.abs(scores_bf - scores_b))) < 0.25

    print("KERNEL_OK")
</pallas_src>

<mosaic_0001>
module attributes {stable_mosaic.version = 11 : i64} {
  func.func @_s2p_packed_kernel(%arg0: i32, %arg1: memref<1x128xf32, #tpu.memory_space<vmem>>, %arg2: memref<1x1x47xi32, #tpu.memory_space<vmem>>, %arg3: memref<1x47x128xf32, #tpu.memory_space<vmem>>, %arg4: memref<1x15x5xf32, #tpu.memory_space<vmem>>, %arg5: memref<1x5x128xf32, #tpu.memory_space<vmem>>) attributes {dimension_semantics = [#tpu.dimension_semantics<parallel>], iteration_bounds = array<i64: 1>, scalar_prefetch = 0 : i64, scratch_operands = 0 : i64, tpu.core_type = #tpu.core_type<tc>, window_params = [{pipeline_mode = #tpu.pipeline_mode<synchronous>, transform_indices = @transform_0, window_bounds = array<i64: 1, 128>}, {transform_indices = @transform_1, window_bounds = array<i64: 1, 1, 47>}, {transform_indices = @transform_2, window_bounds = array<i64: 1, 47, 128>}, {transform_indices = @transform_3, window_bounds = array<i64: 1, 15, 5>}, {transform_indices = @transform_4, window_bounds = array<i64: 1, 5, 128>}]} {
    %c0 = arith.constant 0 : index
    %c0_0 = arith.constant 0 : index
    %0 = vector.load %arg1[%c0, %c0_0] : memref<1x128xf32, #tpu.memory_space<vmem>>, vector<1x128xf32>
    %c0_1 = arith.constant 0 : index
    %c0_2 = arith.constant 0 : index
    %c0_3 = arith.constant 0 : index
    %1 = vector.load %arg3[%c0_1, %c0_2, %c0_3] : memref<1x47x128xf32, #tpu.memory_space<vmem>>, vector<1x47x128xf32>
    %2 = vector.shape_cast %1 : vector<1x47x128xf32> to vector<47x128xf32>
    %c0_4 = arith.constant 0 : index
    %c0_5 = arith.constant 0 : index
    %c0_6 = arith.constant 0 : index
    %3 = vector.load %arg2[%c0_4, %c0_5, %c0_6] : memref<1x1x47xi32, #tpu.memory_space<vmem>>, vector<1x1x47xi32>
    %4 = vector.shape_cast %3 : vector<1x1x47xi32> to vector<1x47xi32>
    %5 = vector.broadcast %0 : vector<1x128xf32> to vector<47x128xf32>
    %6 = arith.subf %2, %5 : vector<47x128xf32>
    %7 = vector.extract_strided_slice %2 {offsets = [0, 0], sizes = [32, 128], strides = [1, 1]} : vector<47x128xf32> to vector<32x128xf32>
    %cst = arith.constant dense<0.000000e+00> : vector<128xf32>
    %8 = vector.multi_reduction <add>, %7, %cst [0] : vector<32x128xf32> to vector<128xf32>
    %9 = vector.shape_cast %8 : vector<128xf32> to vector<1x128xf32>
    %cst_7 = arith.constant 4.000000e-02 : f32
    %10 = vector.broadcast %cst_7 : f32 to vector<1x128xf32>
    %11 = arith.mulf %9, %10 : vector<1x128xf32>
    %12 = vector.extract_strided_slice %2 {offsets = [32, 0], sizes = [15, 128], strides = [1, 1]} : vector<47x128xf32> to vector<15x128xf32>
    %cst_8 = arith.constant dense<0.000000e+00> : vector<128xf32>
    %13 = vector.multi_reduction <add>, %12, %cst_8 [0] : vector<15x128xf32> to vector<128xf32>
    %14 = vector.shape_cast %13 : vector<128xf32> to vector<1x128xf32>
    %cst_9 = arith.constant 0.0666666701 : f32
    %15 = vector.broadcast %cst_9 : f32 to vector<1x128xf32>
    %16 = arith.mulf %14, %15 : vector<1x128xf32>
    %17 = arith.subf %11, %16 : vector<1x128xf32>
    %18 = tpu.iota {dimensions = array<i32: 0>} : vector<47x1xi32>
    %c32_i32 = arith.constant 32 : i32
    %19 = vector.broadcast %c32_i32 : i32 to vector<47x1xi32>
    %20 = arith.cmpi sge, %18, %19 : vector<47x1xi32>
    %21 = arith.extui %20 : vector<47x1xi1> to vector<47x1xi32>
    %22 = arith.sitofp %21 : vector<47x1xi32> to vector<47x1xf32>
    %23 = vector.broadcast %22 : vector<47x1xf32> to vector<47x128xf32>
    %24 = vector.broadcast %17 : vector<1x128xf32> to vector<47x128xf32>
    %25 = arith.mulf %23, %24 : vector<47x128xf32>
    %26 = arith.addf %6, %25 : vector<47x128xf32>
    %27 = tpu.iota {dimensions = array<i32: 0>} : vector<5x47xi32>
    %28 = vector.broadcast %4 : vector<1x47xi32> to vector<5x47xi32>
    %29 = arith.cmpi eq, %28, %27 : vector<5x47xi32>
    %30 = arith.extui %29 : vector<5x47xi1> to vector<5x47xi32>
    %31 = arith.sitofp %30 : vector<5x47xi32> to vector<5x47xf32>
    %cst_10 = arith.constant dense<0.000000e+00> : vector<5xf32>
    %32 = vector.multi_reduction <add>, %31, %cst_10 [1] : vector<5x47xf32> to vector<5xf32>
    %33 = vector.shape_cast %32 : vector<5xf32> to vector<5x1xf32>
    %34 = tpu.reciprocal %33 : vector<5x1xf32> -> vector<5x1xf32>
    %cst_11 = arith.constant dense<0.000000e+00> : vector<5x128xf32>
    %35 = tpu.matmul %31, %26, %cst_11 {dimension_numbers = #tpu.dot_dimension_numbers<[1], [0], [0], [1], [0, 0, 1, 1], [], []>} : vector<5x47xf32>, vector<47x128xf32>, vector<5x128xf32> -> vector<5x128xf32>
    %36 = vector.broadcast %34 : vector<5x1xf32> to vector<5x128xf32>
    %37 = arith.mulf %35, %36 : vector<5x128xf32>
    %38 = arith.mulf %37, %37 : vector<5x128xf32>
    %cst_12 = arith.constant dense<0.000000e+00> : vector<5xf32>
    %39 = vector.multi_reduction <add>, %38, %cst_12 [1] : vector<5x128xf32> to vector<5xf32>
    %40 = vector.shape_cast %39 : vector<5xf32> to vector<5x1xf32>
    %cst_13 = arith.constant 1.000000e-24 : f32
    %41 = vector.broadcast %cst_13 : f32 to vector<5x1xf32>
    %42 = arith.maximumf %40, %41 : vector<5x1xf32>
    %43 = math.rsqrt %42 : vector<5x1xf32>
    %44 = vector.broadcast %43 : vector<5x1xf32> to vector<5x128xf32>
    %45 = arith.mulf %37, %44 : vector<5x128xf32>
    %46 = arith.mulf %26, %26 : vector<47x128xf32>
    %cst_14 = arith.constant dense<0.000000e+00> : vector<47xf32>
    %47 = vector.multi_reduction <add>, %46, %cst_14 [1] : vector<47x128xf32> to vector<47xf32>
    %48 = vector.shape_cast %47 : vector<47xf32> to vector<47x1xf32>
    %cst_15 = arith.constant 1.000000e-24 : f32
    %49 = vector.broadcast %cst_15 : f32 to vector<47x1xf32>
    %50 = arith.maximumf %48, %49 : vector<47x1xf32>
    %51 = math.rsqrt %50 : vector<47x1xf32>
    %52 = vector.broadcast %51 : vector<47x1xf32> to vector<47x128xf32>
    %53 = arith.mulf %26, %52 : vector<47x128xf32>
    %cst_16 = arith.constant dense<0.000000e+00> : vector<5x47xf32>
    %54 = tpu.matmul %45, %53, %cst_16 {dimension_numbers = #tpu.dot_dimension_numbers<[1], [1], [0], [0], [0, 0, 1, 0], [], []>} : vector<5x128xf32>, vector<47x128xf32>, vector<5x47xf32> -> vector<5x47xf32>
    %55 = math.exp %54 : vector<5x47xf32>
    %56 = arith.sitofp %27 : vector<5x47xi32> to vector<5x47xf32>
    %cst_17 = arith.constant dense<0xFF800000> : vector<47xf32>
    %57 = vector.multi_reduction <maximumf>, %55, %cst_17 [0] : vector<5x47xf32> to vector<47xf32>
    %58 = vector.shape_cast %57 : vector<47xf32> to vector<1x47xf32>
    %59 = vector.broadcast %58 : vector<1x47xf32> to vector<5x47xf32>
    %60 = arith.cmpf oge, %55, %59 : vector<5x47xf32>
    %cst_18 = arith.constant 5.000000e+00 : f32
    %61 = vector.broadcast %cst_18 : f32 to vector<5x47xf32>
    %62 = arith.select %60, %56, %61 : vector<5x47xi1>, vector<5x47xf32>
    %cst_19 = arith.constant dense<0x7F800000> : vector<47xf32>
    %63 = vector.multi_reduction <minimumf>, %62, %cst_19 [0] : vector<5x47xf32> to vector<47xf32>
    %64 = vector.shape_cast %63 : vector<47xf32> to vector<1x47xf32>
    %65 = vector.broadcast %64 : vector<1x47xf32> to vector<5x47xf32>
    %66 = arith.cmpf oeq, %56, %65 : vector<5x47xf32>
    %67 = arith.extui %66 : vector<5x47xi1> to vector<5x47xi32>
    %68 = arith.sitofp %67 : vector<5x47xi32> to vector<5x47xf32>
    %69 = tpu.iota {dimensions = array<i32: 1>} : vector<1x47xi32>
    %c32_i32_20 = arith.constant 32 : i32
    %70 = vector.broadcast %c32_i32_20 : i32 to vector<1x47xi32>
    %71 = arith.cmpi sge, %69, %70 : vector<1x47xi32>
    %72 = vector.shape_cast %71 : vector<1x47xi1> to vector<1x47xi1>
    %73 = vector.broadcast %72 : vector<1x47xi1> to vector<5x47xi1>
    %74 = arith.select %73, %68, %31 : vector<5x47xi1>, vector<5x47xf32>
    %75 = arith.mulf %74, %55 : vector<5x47xf32>
    %cst_21 = arith.constant dense<0.000000e+00> : vector<5xf32>
    %76 = vector.multi_reduction <add>, %75, %cst_21 [1] : vector<5x47xf32> to vector<5xf32>
    %77 = vector.shape_cast %76 : vector<5xf32> to vector<5x1xf32>
    %78 = tpu.reciprocal %77 : vector<5x1xf32> -> vector<5x1xf32>
    %79 = vector.broadcast %78 : vector<5x1xf32> to vector<5x47xf32>
    %80 = arith.mulf %75, %79 : vector<5x47xf32>
    %cst_22 = arith.constant dense<0.000000e+00> : vector<5x128xf32>
    %81 = tpu.matmul %80, %26, %cst_22 {dimension_numbers = #tpu.dot_dimension_numbers<[1], [0], [0], [1], [0, 0, 1, 1], [], []>} : vector<5x47xf32>, vector<47x128xf32>, vector<5x128xf32> -> vector<5x128xf32>
    %82 = vector.extract_strided_slice %6 {offsets = [32, 0], sizes = [15, 128], strides = [1, 1]} : vector<47x128xf32> to vector<15x128xf32>
    %83 = arith.mulf %82, %82 : vector<15x128xf32>
    %cst_23 = arith.constant dense<0.000000e+00> : vector<15xf32>
    %84 = vector.multi_reduction <add>, %83, %cst_23 [1] : vector<15x128xf32> to vector<15xf32>
    %85 = vector.shape_cast %84 : vector<15xf32> to vector<15x1xf32>
    %cst_24 = arith.constant 1.000000e+00 : f32
    %86 = vector.broadcast %cst_24 : f32 to vector<1x128xf32>
    %87 = arith.mulf %81, %81 : vector<5x128xf32>
    %cst_25 = arith.constant dense<0.000000e+00> : vector<1x5xf32>
    %88 = tpu.matmul %86, %87, %cst_25 {dimension_numbers = #tpu.dot_dimension_numbers<[1], [1], [0], [0], [0, 0, 1, 0], [], []>} : vector<1x128xf32>, vector<5x128xf32>, vector<1x5xf32> -> vector<1x5xf32>
    %cst_26 = arith.constant dense<0.000000e+00> : vector<15x5xf32>
    %89 = tpu.matmul %82, %81, %cst_26 {dimension_numbers = #tpu.dot_dimension_numbers<[1], [1], [0], [0], [0, 0, 1, 0], [], []>} : vector<15x128xf32>, vector<5x128xf32>, vector<15x5xf32> -> vector<15x5xf32>
    %90 = vector.broadcast %85 : vector<15x1xf32> to vector<15x5xf32>
    %91 = vector.broadcast %88 : vector<1x5xf32> to vector<15x5xf32>
    %92 = arith.addf %90, %91 : vector<15x5xf32>
    %cst_27 = arith.constant 2.000000e+00 : f32
    %93 = vector.broadcast %cst_27 : f32 to vector<15x5xf32>
    %94 = arith.mulf %93, %89 : vector<15x5xf32>
    %95 = arith.subf %92, %94 : vector<15x5xf32>
    %cst_28 = arith.constant 0.000000e+00 : f32
    %96 = vector.broadcast %cst_28 : f32 to vector<15x5xf32>
    %97 = arith.maximumf %95, %96 : vector<15x5xf32>
    %98 = math.sqrt %97 : vector<15x5xf32>
    %cst_29 = arith.constant 0.000000e+00 : f32
    %99 = vector.broadcast %cst_29 : f32 to vector<15x5xf32>
    %100 = arith.subf %99, %98 : vector<15x5xf32>
    %c0_30 = arith.constant 0 : index
    %c0_31 = arith.constant 0 : index
    %c0_32 = arith.constant 0 : index
    %101 = vector.load %arg4[%c0_30, %c0_31, %c0_32] : memref<1x15x5xf32, #tpu.memory_space<vmem>>, vector<1x15x5xf32>
    %102 = vector.shape_cast %101 : vector<1x15x5xf32> to vector<15x5xf32>
    %103 = vector.shape_cast %100 : vector<15x5xf32> to vector<1x15x5xf32>
    tpu.vector_store %arg4[%c0_30, %c0_31, %c0_32], %103 {strides = array<i32>} : memref<1x15x5xf32, #tpu.memory_space<vmem>>, vector<1x15x5xf32>,
    %c0_33 = arith.constant 0 : index
    %c0_34 = arith.constant 0 : index
    %c0_35 = arith.constant 0 : index
    %104 = vector.load %arg5[%c0_33, %c0_34, %c0_35] : memref<1x5x128xf32, #tpu.memory_space<vmem>>, vector<1x5x128xf32>
    %105 = vector.shape_cast %104 : vector<1x5x128xf32> to vector<5x128xf32>
    %106 = vector.shape_cast %81 : vector<5x128xf32> to vector<1x5x128xf32>
    tpu.vector_store %arg5[%c0_33, %c0_34, %c0_35], %106 {strides = array<i32>} : memref<1x5x128xf32, #tpu.memory_space<vmem>>, vector<1x5x128xf32>,
    return
  }
  func.func @transform_0(%arg0: i32) -> (i32, i32) {
    %c0_i32 = arith.constant 0 : i32
    %c0_i32_0 = arith.constant 0 : i32
    %c0_i32_1 = arith.constant 0 : i32
    return %c0_i32, %c0_i32_0 : i32, i32
  }
  func.func @transform_1(%arg0: i32) -> (i32, i32, i32) {
    %c0_i32 = arith.constant 0 : i32
    %c0_i32_0 = arith.constant 0 : i32
    %c0_i32_1 = arith.constant 0 : i32
    return %arg0, %c0_i32, %c0_i32_0 : i32, i32, i32
  }
  func.func @transform_2(%arg0: i32) -> (i32, i32, i32) {
    %c0_i32 = arith.constant 0 : i32
    %c0_i32_0 = arith.constant 0 : i32
    %c0_i32_1 = arith.constant 0 : i32
    return %arg0, %c0_i32, %c0_i32_0 : i32, i32, i32
  }
  func.func @transform_3(%arg0: i32) -> (i32, i32, i32) {
    %c0_i32 = arith.constant 0 : i32
    %c0_i32_0 = arith.constant 0 : i32
    %c0_i32_1 = arith.constant 0 : i32
    return %arg0, %c0_i32, %c0_i32_0 : i32, i32, i32
  }
  func.func @transform_4(%arg0: i32) -> (i32, i32, i32) {
    %c0_i32 = arith.constant 0 : i32
    %c0_i32_0 = arith.constant 0 : i32
    %c0_i32_1 = arith.constant 0 : i32
    return %arg0, %c0_i32, %c0_i32_0 : i32, i32, i32
  }
}

</mosaic_0001>

<llo_original>
// kernel: tpu_custom_call.1
$region0: #{tpu_custom_call.1}
  #allocation0 [shape = 'u32[]', space=smem, size = 0x4, offset = 0x4, fixed_abs, tag = 'smem constant byte address 0x4 - core index']
  #allocation1 [shape = 'u32[144,128]{1,0:T(1,128)}', space=vmem, size = 0x12000, scoped, tag = 'internal scratch']
  %s0 = inlined_call_operand.vmem [shape: f32[1,128], index: 0, kind: input, shape index: {}]
  %s1 = inlined_call_operand.vmem [shape: s32[1,1,47], index: 1, kind: input, shape index: {}]
  %s2 = inlined_call_operand.vmem [shape: f32[1,47,128], index: 2, kind: input, shape index: {}]
  %s3 = inlined_call_operand.vmem [shape: f32[1,15,5], index: 3, kind: output, shape index: {0}]
  %s4 = inlined_call_operand.vmem [shape: f32[1,5,128], index: 4, kind: output, shape index: {1}]
  %5 = xla_tuple %s3, %s4
  %s6 = sld [smem:[#allocation0]]
  $region30: #{tpu_custom_call.1} parent=0
    _
  %s8 = ssub.s32 1, %s6
  %s9 = scalar_select 0, %s8, %s6
  // Predicated region
  $region2: #{tpu_custom_call.1} parent=0 // pred_check
    _
  $region3: #{tpu_custom_call.1} parent=0 // pred_check_branch
    %11 = sbr.rel (0) target = $region5
  $region4: #{tpu_custom_call.1} parent=0 // pred_region
    _
  $region5: #{tpu_custom_call.1} parent=0 // pred_fallthru
    _
  // Predicated region
  $region6: #{tpu_custom_call.1} parent=0 // pred_check
    _
  $region7: #{tpu_custom_call.1} parent=0 // pred_check_branch
    %13 = sbr.rel (0) target = $region9
  $region8: #{tpu_custom_call.1} parent=0 // pred_region
    _
  $region9: #{tpu_custom_call.1} parent=0 // pred_fallthru
    _
  // Predicated region
  $region10: #{tpu_custom_call.1} parent=0 // pred_check
    _
  $region11: #{tpu_custom_call.1} parent=0 // pred_check_branch
    %15 = sbr.rel (0) target = $region13
  $region12: #{tpu_custom_call.1} parent=0 // pred_region
    _
  $region13: #{tpu_custom_call.1} parent=0 // pred_fallthru
    _
  %v16 = vld [vmem:[%s0] sm:$0x1]
  %v17 = vld [vmem:[%s2] sm:$0xff]
  %v18 = vld [vmem:[%s2 + $0x8] sm:$0xff]
  %v19 = vld [vmem:[%s2 + $0x10] sm:$0xff]
  %v20 = vld [vmem:[%s2 + $0x18] sm:$0xff]
  %v21 = vld [vmem:[%s2 + $0x20] sm:$0xff]
  %v22 = vld [vmem:[%s2 + $0x28] sm:$0x7f]
  %v23 = vld [vmem:[%s1] sm:$0x1]
  %v25 = vlaneseq
  %v26 = vshrl.u32 %v25, 7
  %v27 = vsub.s32 0, %v26
  %v28 = vrot.slane %v16, %v27
  %v30 = vsub.f32 %v17, %v28
  %v31 = vsub.f32 %v18, %v28
  %v32 = vsub.f32 %v19, %v28
  %v33 = vsub.f32 %v20, %v28
  %v34 = vsub.f32 %v21, %v28
  %v35 = vsub.f32 %v22, %v28
  %v36 = vadd.f32 %v17, %v18
  %v37 = vadd.f32 %v36, %v19
  %v38 = vadd.f32 %v37, %v20
  %v39 = vrot.slane %v38, 4
  %v40 = vadd.f32 %v38, %v39
  %v41 = vrot.slane %v40, 2
  %v42 = vadd.f32 %v40, %v41
  %v43 = vrot.slane %v42, 1
  %v44 = vadd.f32 %v42, %v43
  %v45 = vmul.f32 %v44, 0.04
  %vm46 = vcmask 1046528
  %v47 = vsel %vm46, %v22, 0.0
  %v48 = vadd.f32 %v21, %v47
  %v49 = vrot.slane %v48, 4
  %v50 = vadd.f32 %v48, %v49
  %v51 = vrot.slane %v50, 2
  %v52 = vadd.f32 %v50, %v51
  %v53 = vrot.slane %v52, 1
  %v54 = vadd.f32 %v52, %v53
  %v55 = vmul.f32 %v54, 0.06666667
  %v56 = vsub.f32 %v45, %v55
  %v57 = vlaneseq
  %v58 = vshrl.u32 %v57, 7
  %v59 = vadd.s32 %v58, 8
  %v60 = vadd.s32 %v58, 16
  %v61 = vadd.s32 %v58, 24
  %v62 = vadd.s32 %v58, 32
  %v63 = vadd.s32 %v58, 40
  %vm64 = vcmp.ge.s32.totalorder %v58, 32
  %vm65 = vcmp.ge.s32.totalorder %v59, 32
  %vm66 = vcmp.ge.s32.totalorder %v60, 32
  %vm67 = vcmp.ge.s32.totalorder %v61, 32
  %vm68 = vcmp.ge.s32.totalorder %v62, 32
  %vm69 = vcmp.ge.s32.totalorder %v63, 32
  %v70 = vsel %vm64, 1, 0
  %v71 = vsel %vm65, 1, 0
  %v72 = vsel %vm66, 1, 0
  %v73 = vsel %vm67, 1, 0
  %v74 = vsel %vm68, 1, 0
  %v75 = vsel %vm69, 1, 0
  %v76 = vcvt.s32.f32 %v70
  %v77 = vcvt.s32.f32 %v71
  %v78 = vcvt.s32.f32 %v72
  %v79 = vcvt.s32.f32 %v73
  %v80 = vcvt.s32.f32 %v74
  %v81 = vcvt.s32.f32 %v75
  %v82 = vmul.f32 %v76, %v56
  %v83 = vmul.f32 %v77, %v56
  %v84 = vmul.f32 %v78, %v56
  %v85 = vmul.f32 %v79, %v56
  %v86 = vmul.f32 %v80, %v56
  %v87 = vmul.f32 %v81, %v56
  %v88 = vadd.f32 %v30, %v82
  %v89 = vadd.f32 %v31, %v83
  %v90 = vadd.f32 %v32, %v84
  %v91 = vadd.f32 %v33, %v85
  %v92 = vadd.f32 %v34, %v86
  %v93 = vadd.f32 %v35, %v87
  %v94 = vlaneseq
  %v95 = vshrl.u32 %v94, 7
  %v96 = vsub.s32 0, %v95
  %v97 = vrot.slane %v23, %v96
  %vm98 = vcmp.eq.s32.totalorder %v97, %v58
  %v99 = vsel %vm98, 1, 0
  %v100 = vcvt.s32.f32 %v99
  %vm101 = vcmask 380928
  %v102 = vsel %vm101, %v100, 0.0
  %103 = vadd.xlane.f32.xlu0 %v102
  %v104 = vpop.xlane.xlu0 %103
  %v105 = vrcp.pop %v104
  %vm106 = vcmask 384000
  %v108 = vsel %vm106, %v100, 0
  %v111 = vsel %vm46, %v93, 0
  %113 = vmatprep.subr.mxu0 0.0
  %114 = vmatpush1.msra.mxu0 %v88
  %115 = vmatprep.subr.mxu0 0.0
  %116 = vmatpush1.msra.mxu0 %v89
  %117 = vmatprep.subr.mxu0 0.0
  %118 = vmatpush1.msra.mxu0 %v90
  %119 = vmatprep.subr.mxu0 0.0
  %120 = vmatpush1.msra.mxu0 %v91
  %121 = vmatprep.subr.mxu0 0.0
  %122 = vmatpush1.msra.mxu0 %v92
  %123 = vmatprep.subr.mxu0 0.0
  %124 = vmatpush1.msra.mxu0 %v111
  %125 = vmatprep.subr.mxu0 0.0
  %126 = vmatpush1.msra.mxu0 0.0
  %127 = vmatprep.subr.mxu0 0.0
  %128 = vmatpush1.msra.mxu0 0.0
  %129 = vmatprep.subr.mxu0 0.0
  %130 = vmatpush1.msra.mxu0 0.0
  %131 = vmatprep.subr.mxu0 0.0
  %132 = vmatpush1.msra.mxu0 0.0
  %133 = vmatprep.subr.mxu0 0.0
  %134 = vmatpush1.msra.mxu0 0.0
  %135 = vmatprep.subr.mxu0 0.0
  %136 = vmatpush1.msra.mxu0 0.0
  %137 = vmatprep.subr.mxu0 0.0
  %138 = vmatpush1.msra.mxu0 0.0
  %139 = vmatprep.subr.mxu0 0.0
  %140 = vmatpush1.msra.mxu0 0.0
  %141 = vmatprep.subr.mxu0 0.0
  %142 = vmatpush1.msra.mxu0 0.0
  %143 = vmatprep.subr.mxu0 0.0
  %144 = vmatpush1.msra.mxu0 0.0
  %145 = vmatprep.subr.mxu0 0.0
  %146 = vmatpush1.msra.mxu0 0.0
  %147 = vmatprep.subr.mxu0 0.0
  %148 = vmatpush1.msra.mxu0 0.0
  %149 = vmatprep.subr.mxu0 0.0
  %150 = vmatpush1.msra.mxu0 0.0
  %151 = vmatprep.subr.mxu0 0.0
  %152 = vmatpush1.msra.mxu0 0.0
  %153 = vmatprep.subr.mxu0 0.0
  %154 = vmatpush1.msra.mxu0 0.0
  %155 = vmatprep.subr.mxu0 0.0
  %156 = vmatpush1.msra.mxu0 0.0
  %157 = vmatprep.subr.mxu0 0.0
  %158 = vmatpush1.msra.mxu0 0.0
  %159 = vmatprep.subr.mxu0 0.0
  %160 = vmatpush1.msra.mxu0 0.0
  %161 = vmatprep.subr.mxu0 0.0
  %162 = vmatpush1.msra.mxu0 0.0
  %163 = vmatprep.subr.mxu0 0.0
  %164 = vmatpush1.msra.mxu0 0.0
  %165 = vmatprep.subr.mxu0 0.0
  %166 = vmatpush1.msra.mxu0 0.0
  %167 = vmatprep.subr.mxu0 0.0
  %168 = vmatpush1.msra.mxu0 0.0
  %169 = vmatprep.subr.mxu0 0.0
  %170 = vmatpush1.msra.mxu0 0.0
  %171 = vmatprep.subr.mxu0 0.0
  %172 = vmatpush1.msra.mxu0 0.0
  %173 = vmatprep.subr.mxu0 0.0
  %174 = vmatpush1.msra.mxu0 0.0
  %175 = vmatprep.subr.mxu0 0.0
  %176 = vmatpush1.msra.mxu0 0.0
  %177 = vmatprep.mubr.f32.mxu0 0.0
  %178 = vmatmul.mubr.f32.gmra.mrb[0].mxu0 %v108
  %v179 = vpop.f32.mrb[0].mxu0
  %v180 = vadd.f32 0.0, %v179
  %v181 = vpop.f32.mrb[0].mxu0
  %182 = vdwg.mxu0
  %v183 = vmul.f32 %v180, %v105
  %v184 = vmul.f32 %v183, %v183
  %vm185 = vcmask 1044480
  %v186 = vsel %vm185, %v184, 0.0
  %187 = vadd.xlane.f32.xlu0 %v186
  %v188 = vpop.xlane.xlu0 %187
  %v189 = vmax.f32 %v188, 1e-24
  %v190 = vrsqrt.pop %v189
  %v191 = vmul.f32 %v183, %v190
  %v192 = vmul.f32 %v88, %v88
  %v193 = vmul.f32 %v89, %v89
  %v194 = vmul.f32 %v90, %v90
  %v195 = vmul.f32 %v91, %v91
  %v196 = vmul.f32 %v92, %v92
  %v197 = vmul.f32 %v93, %v93
  %198 = vadd.xlane.f32.xlu0 %v192
  %v199 = vpop.xlane.xlu0 %198
  %200 = vadd.xlane.f32.xlu0 %v193
  %v201 = vpop.xlane.xlu0 %200
  %202 = vadd.xlane.f32.xlu0 %v194
  %v203 = vpop.xlane.xlu0 %202
  %204 = vadd.xlane.f32.xlu0 %v195
  %v205 = vpop.xlane.xlu0 %204
  %206 = vadd.xlane.f32.xlu0 %v196
  %v207 = vpop.xlane.xlu0 %206
  %v208 = vsel %vm46, %v197, 0.0
  %209 = vadd.xlane.f32.xlu0 %v208
  %v210 = vpop.xlane.xlu0 %209
  %v211 = vmax.f32 %v199, 1e-24
  %v212 = vmax.f32 %v201, 1e-24
  %v213 = vmax.f32 %v203, 1e-24
  %v214 = vmax.f32 %v205, 1e-24
  %v215 = vmax.f32 %v207, 1e-24
  %v216 = vmax.f32 %v210, 1e-24
  %v217 = vrsqrt.pop %v211
  %v218 = vrsqrt.pop %v212
  %v219 = vrsqrt.pop %v213
  %v220 = vrsqrt.pop %v214
  %v221 = vrsqrt.pop %v215
  %v222 = vrsqrt.pop %v216
  %v223 = vmul.f32 %v88, %v217
  %v224 = vmul.f32 %v89, %v218
  %v225 = vmul.f32 %v90, %v219
  %v226 = vmul.f32 %v91, %v220
  %v227 = vmul.f32 %v92, %v221
  %v228 = vmul.f32 %v93, %v222
  %229 = vmatprep.subr.mxu0 0.0
  %230 = vmatpush1.xpose.msra.mxu0 %v223
  %231 = vmatprep.subr.mxu0 0.0
  %232 = vmatpush1.xpose.msra.mxu0 %v224
  %233 = vmatprep.subr.mxu0 0.0
  %234 = vmatpush1.xpose.msra.mxu0 %v225
  %235 = vmatprep.subr.mxu0 0.0
  %236 = vmatpush1.xpose.msra.mxu0 %v226
  %237 = vmatprep.subr.mxu0 0.0
  %238 = vmatpush1.xpose.msra.mxu0 %v227
  %239 = vmatprep.subr.mxu0 0.0
  %240 = vmatpush1.xpose.msra.mxu0 %v228
  %241 = vmatprep.subr.mxu0 0.0
  %242 = vmatpush1.xpose.msra.mxu0 0.0
  %243 = vmatprep.subr.mxu0 0.0
  %244 = vmatpush1.xpose.msra.mxu0 0.0
  %245 = vmatprep.subr.mxu0 0.0
  %246 = vmatpush1.xpose.msra.mxu0 0.0
  %247 = vmatprep.subr.mxu0 0.0
  %248 = vmatpush1.xpose.msra.mxu0 0.0
  %249 = vmatprep.subr.mxu0 0.0
  %250 = vmatpush1.xpose.msra.mxu0 0.0
  %251 = vmatprep.subr.mxu0 0.0
  %252 = vmatpush1.xpose.msra.mxu0 0.0
  %253 = vmatprep.subr.mxu0 0.0
  %254 = vmatpush1.xpose.msra.mxu0 0.0
  %255 = vmatprep.subr.mxu0 0.0
  %256 = vmatpush1.xpose.msra.mxu0 0.0
  %257 = vmatprep.subr.mxu0 0.0
  %258 = vmatpush1.xpose.msra.mxu0 0.0
  %259 = vmatprep.subr.mxu0 0.0
  %260 = vmatpush1.xpose.msra.mxu0 0.0
  %261 = vmatprep.subr.mxu0 0.0
  %262 = vmatpush1.xpose.msra.mxu0 0.0
  %263 = vmatprep.subr.mxu0 0.0
  %264 = vmatpush1.xpose.msra.mxu0 0.0
  %265 = vmatprep.subr.mxu0 0.0
  %266 = vmatpush1.xpose.msra.mxu0 0.0
  %267 = vmatprep.subr.mxu0 0.0
  %268 = vmatpush1.xpose.msra.mxu0 0.0
  %269 = vmatprep.subr.mxu0 0.0
  %270 = vmatpush1.xpose.msra.mxu0 0.0
  %271 = vmatprep.subr.mxu0 0.0
  %272 = vmatpush1.xpose.msra.mxu0 0.0
  %273 = vmatprep.subr.mxu0 0.0
  %274 = vmatpush1.xpose.msra.mxu0 0.0
  %275 = vmatprep.subr.mxu0 0.0
  %276 = vmatpush1.xpose.msra.mxu0 0.0
  %277 = vmatprep.subr.mxu0 0.0
  %278 = vmatpush1.xpose.msra.mxu0 0.0
  %279 = vmatprep.subr.mxu0 0.0
  %280 = vmatpush1.xpose.msra.mxu0 0.0
  %281 = vmatprep.subr.mxu0 0.0
  %282 = vmatpush1.xpose.msra.mxu0 0.0
  %283 = vmatprep.subr.mxu0 0.0
  %284 = vmatpush1.xpose.msra.mxu0 0.0
  %285 = vmatprep.subr.mxu0 0.0
  %286 = vmatpush1.xpose.msra.mxu0 0.0
  %287 = vmatprep.subr.mxu0 0.0
  %288 = vmatpush1.xpose.msra.mxu0 0.0
  %289 = vmatprep.subr.mxu0 0.0
  %290 = vmatpush1.xpose.msra.mxu0 0.0
  %291 = vmatprep.subr.mxu0 0.0
  %292 = vmatpush1.xpose.msra.mxu0 0.0
  %293 = vmatprep.mubr.f32.mxu0 0.0
  %294 = vmatmul.mubr.f32.gmra.mrb[0].mxu0 %v191
  %v295 = vpop.f32.mrb[0].mxu0
  %v296 = vadd.f32 0.0, %v295
  %v297 = vpop.f32.mrb[0].mxu0
  %298 = vdwg.mxu0
  %v299 = vmul.f32 %v296, 1.442695
  %v300 = vpow.pop %v299
  %v301 = vcvt.s32.f32 %v58
  %v302 = vsel %vm101, %v300, -inf
  %v303 = vrot.slane %v302, 4
  %v304 = vmax.f32 %v302, %v303
  %v305 = vrot.slane %v304, 2
  %v306 = vmax.f32 %v304, %v305
  %v307 = vrot.slane %v306, 1
  %v308 = vmax.f32 %v306, %v307
  %vm309 = vcmp.ge.f32.partialorder %v300, %v308
  %v310 = vsel %vm309, %v301, 5.0
  %v311 = vsel %vm101, %v310, inf
  %v312 = vrot.slane %v311, 4
  %v313 = vmin.f32 %v311, %v312
  %v314 = vrot.slane %v313, 2
  %v315 = vmin.f32 %v313, %v314
  %v316 = vrot.slane %v315, 1
  %v317 = vmin.f32 %v315, %v316
  %vm318 = vcmp.eq.f32.partialorder %v301, %v317
  %v319 = vsel %vm318, 1, 0
  %v320 = vcvt.s32.f32 %v319
  %v321 = vlaneseq
  %v322 = vand.u32 %v321, 127
  %vm323 = vcmp.ge.s32.totalorder %v322, 32
  %v324 = vsel %vm323, 1, 0
  %vm325 = vcmp.eq.s32.totalorder %v324, 1
  %v326 = vsel %vm325, %v320, %v100
  %v327 = vmul.f32 %v326, %v300
  %v328 = vsel %vm101, %v327, 0.0
  %329 = vadd.xlane.f32.xlu0 %v328
  %v330 = vpop.xlane.xlu0 %329
  %v331 = vrcp.pop %v330
  %v332 = vmul.f32 %v327, %v331
  %v334 = vsel %vm106, %v332, 0
  %336 = vmatprep.subr.mxu0 0.0
  %337 = vmatpush1.msra.mxu0 %v88
  %338 = vmatprep.subr.mxu0 0.0
  %339 = vmatpush1.msra.mxu0 %v89
  %340 = vmatprep.subr.mxu0 0.0
  %341 = vmatpush1.msra.mxu0 %v90
  %342 = vmatprep.subr.mxu0 0.0
  %343 = vmatpush1.msra.mxu0 %v91
  %344 = vmatprep.subr.mxu0 0.0
  %345 = vmatpush1.msra.mxu0 %v92
  %346 = vmatprep.subr.mxu0 0.0
  %347 = vmatpush1.msra.mxu0 %v111
  %348 = vmatprep.subr.mxu0 0.0
  %349 = vmatpush1.msra.mxu0 0.0
  %350 = vmatprep.subr.mxu0 0.0
  %351 = vmatpush1.msra.mxu0 0.0
  %352 = vmatprep.subr.mxu0 0.0
  %353 = vmatpush1.msra.mxu0 0.0
  %354 = vmatprep.subr.mxu0 0.0
  %355 = vmatpush1.msra.mxu0 0.0
  %356 = vmatprep.subr.mxu0 0.0
  %357 = vmatpush1.msra.mxu0 0.0
  %358 = vmatprep.subr.mxu0 0.0
  %359 = vmatpush1.msra.mxu0 0.0
  %360 = vmatprep.subr.mxu0 0.0
  %361 = vmatpush1.msra.mxu0 0.0
  %362 = vmatprep.subr.mxu0 0.0
  %363 = vmatpush1.msra.mxu0 0.0
  %364 = vmatprep.subr.mxu0 0.0
  %365 = vmatpush1.msra.mxu0 0.0
  %366 = vmatprep.subr.mxu0 0.0
  %367 = vmatpush1.msra.mxu0 0.0
  %368 = vmatprep.subr.mxu0 0.0
  %369 = vmatpush1.msra.mxu0 0.0
  %370 = vmatprep.subr.mxu0 0.0
  %371 = vmatpush1.msra.mxu0 0.0
  %372 = vmatprep.subr.mxu0 0.0
  %373 = vmatpush1.msra.mxu0 0.0
  %374 = vmatprep.subr.mxu0 0.0
  %375 = vmatpush1.msra.mxu0 0.0
  %376 = vmatprep.subr.mxu0 0.0
  %377 = vmatpush1.msra.mxu0 0.0
  %378 = vmatprep.subr.mxu0 0.0
  %379 = vmatpush1.msra.mxu0 0.0
  %380 = vmatprep.subr.mxu0 0.0
  %381 = vmatpush1.msra.mxu0 0.0
  %382 = vmatprep.subr.mxu0 0.0
  %383 = vmatpush1.msra.mxu0 0.0
  %384 = vmatprep.subr.mxu0 0.0
  %385 = vmatpush1.msra.mxu0 0.0
  %386 = vmatprep.subr.mxu0 0.0
  %387 = vmatpush1.msra.mxu0 0.0
  %388 = vmatprep.subr.mxu0 0.0
  %389 = vmatpush1.msra.mxu0 0.0
  %390 = vmatprep.subr.mxu0 0.0
  %391 = vmatpush1.msra.mxu0 0.0
  %392 = vmatprep.subr.mxu0 0.0
  %393 = vmatpush1.msra.mxu0 0.0
  %394 = vmatprep.subr.mxu0 0.0
  %395 = vmatpush1.msra.mxu0 0.0
  %396 = vmatprep.subr.mxu0 0.0
  %397 = vmatpush1.msra.mxu0 0.0
  %398 = vmatprep.subr.mxu0 0.0
  %399 = vmatpush1.msra.mxu0 0.0
  %400 = vmatprep.mubr.f32.mxu0 0.0
  %401 = vmatmul.mubr.f32.gmra.mrb[0].mxu0 %v334
  %v402 = vpop.f32.mrb[0].mxu0
  %v403 = vadd.f32 0.0, %v402
  %v404 = vpop.f32.mrb[0].mxu0
  %405 = vdwg.mxu0
  %v406 = vmul.f32 %v34, %v34
  %v407 = vmul.f32 %v35, %v35
  %408 = vadd.xlane.f32.xlu0 %v406
  %v409 = vpop.xlane.xlu0 %408
  %v410 = vsel %vm46, %v407, 0.0
  %411 = vadd.xlane.f32.xlu0 %v410
  %v412 = vpop.xlane.xlu0 %411
  %v413 = vmul.f32 %v403, %v403
  %414 = vmatprep.subr.mxu0 0.0
  %415 = vmatpush1.xpose.msra.mxu0 %v413
  %416 = vmatprep.subr.mxu0 0.0
  %417 = vmatpush1.xpose.msra.mxu0 0.0
  %418 = vmatprep.subr.mxu0 0.0
  %419 = vmatpush1.xpose.msra.mxu0 0.0
  %420 = vmatprep.subr.mxu0 0.0
  %421 = vmatpush1.xpose.msra.mxu0 0.0
  %422 = vmatprep.subr.mxu0 0.0
  %423 = vmatpush1.xpose.msra.mxu0 0.0
  %424 = vmatprep.subr.mxu0 0.0
  %425 = vmatpush1.xpose.msra.mxu0 0.0
  %426 = vmatprep.subr.mxu0 0.0
  %427 = vmatpush1.xpose.msra.mxu0 0.0
  %428 = vmatprep.subr.mxu0 0.0
  %429 = vmatpush1.xpose.msra.mxu0 0.0
  %430 = vmatprep.subr.mxu0 0.0
  %431 = vmatpush1.xpose.msra.mxu0 0.0
  %432 = vmatprep.subr.mxu0 0.0
  %433 = vmatpush1.xpose.msra.mxu0 0.0
  %434 = vmatprep.subr.mxu0 0.0
  %435 = vmatpush1.xpose.msra.mxu0 0.0
  %436 = vmatprep.subr.mxu0 0.0
  %437 = vmatpush1.xpose.msra.mxu0 0.0
  %438 = vmatprep.subr.mxu0 0.0
  %439 = vmatpush1.xpose.msra.mxu0 0.0
  %440 = vmatprep.subr.mxu0 0.0
  %441 = vmatpush1.xpose.msra.mxu0 0.0
  %442 = vmatprep.subr.mxu0 0.0
  %443 = vmatpush1.xpose.msra.mxu0 0.0
  %444 = vmatprep.subr.mxu0 0.0
  %445 = vmatpush1.xpose.msra.mxu0 0.0
  %446 = vmatprep.subr.mxu0 0.0
  %447 = vmatpush1.xpose.msra.mxu0 0.0
  %448 = vmatprep.subr.mxu0 0.0
  %449 = vmatpush1.xpose.msra.mxu0 0.0
  %450 = vmatprep.subr.mxu0 0.0
  %451 = vmatpush1.xpose.msra.mxu0 0.0
  %452 = vmatprep.subr.mxu0 0.0
  %453 = vmatpush1.xpose.msra.mxu0 0.0
  %454 = vmatprep.subr.mxu0 0.0
  %455 = vmatpush1.xpose.msra.mxu0 0.0
  %456 = vmatprep.subr.mxu0 0.0
  %457 = vmatpush1.xpose.msra.mxu0 0.0
  %458 = vmatprep.subr.mxu0 0.0
  %459 = vmatpush1.xpose.msra.mxu0 0.0
  %460 = vmatprep.subr.mxu0 0.0
  %461 = vmatpush1.xpose.msra.mxu0 0.0
  %462 = vmatprep.subr.mxu0 0.0
  %463 = vmatpush1.xpose.msra.mxu0 0.0
  %464 = vmatprep.subr.mxu0 0.0
  %465 = vmatpush1.xpose.msra.mxu0 0.0
  %466 = vmatprep.subr.mxu0 0.0
  %467 = vmatpush1.xpose.msra.mxu0 0.0
  %468 = vmatprep.subr.mxu0 0.0
  %469 = vmatpush1.xpose.msra.mxu0 0.0
  %470 = vmatprep.subr.mxu0 0.0
  %471 = vmatpush1.xpose.msra.mxu0 0.0
  %472 = vmatprep.subr.mxu0 0.0
  %473 = vmatpush1.xpose.msra.mxu0 0.0
  %474 = vmatprep.subr.mxu0 0.0
  %475 = vmatpush1.xpose.msra.mxu0 0.0
  %476 = vmatprep.subr.mxu0 0.0
  %477 = vmatpush1.xpose.msra.mxu0 0.0
  %478 = vmatprep.mubr.f32.mxu0 0.0
  %479 = vmatmul.mubr.f32.gmra.mrb[0].mxu0 1.0
  %v480 = vpop.f32.mrb[0].mxu0
  %v481 = vadd.f32 0.0, %v480
  %v482 = vpop.f32.mrb[0].mxu0
  %483 = vdwg.mxu0
  %484 = vmatprep.subr.mxu0 0.0
  %485 = vmatpush1.xpose.msra.mxu0 %v403
  %486 = vmatprep.subr.mxu0 0.0
  %487 = vmatpush1.xpose.msra.mxu0 0.0
  %488 = vmatprep.subr.mxu0 0.0
  %489 = vmatpush1.xpose.msra.mxu0 0.0
  %490 = vmatprep.subr.mxu0 0.0
  %491 = vmatpush1.xpose.msra.mxu0 0.0
  %492 = vmatprep.subr.mxu0 0.0
  %493 = vmatpush1.xpose.msra.mxu0 0.0
  %494 = vmatprep.subr.mxu0 0.0
  %495 = vmatpush1.xpose.msra.mxu0 0.0
  %496 = vmatprep.subr.mxu0 0.0
  %497 = vmatpush1.xpose.msra.mxu0 0.0
  %498 = vmatprep.subr.mxu0 0.0
  %499 = vmatpush1.xpose.msra.mxu0 0.0
  %500 = vmatprep.subr.mxu0 0.0
  %501 = vmatpush1.xpose.msra.mxu0 0.0
  %502 = vmatprep.subr.mxu0 0.0
  %503 = vmatpush1.xpose.msra.mxu0 0.0
  %504 = vmatprep.subr.mxu0 0.0
  %505 = vmatpush1.xpose.msra.mxu0 0.0
  %506 = vmatprep.subr.mxu0 0.0
  %507 = vmatpush1.xpose.msra.mxu0 0.0
  %508 = vmatprep.subr.mxu0 0.0
  %509 = vmatpush1.xpose.msra.mxu0 0.0
  %510 = vmatprep.subr.mxu0 0.0
  %511 = vmatpush1.xpose.msra.mxu0 0.0
  %512 = vmatprep.subr.mxu0 0.0
  %513 = vmatpush1.xpose.msra.mxu0 0.0
  %514 = vmatprep.subr.mxu0 0.0
  %515 = vmatpush1.xpose.msra.mxu0 0.0
  %516 = vmatprep.subr.mxu0 0.0
  %517 = vmatpush1.xpose.msra.mxu0 0.0
  %518 = vmatprep.subr.mxu0 0.0
  %519 = vmatpush1.xpose.msra.mxu0 0.0
  %520 = vmatprep.subr.mxu0 0.0
  %521 = vmatpush1.xpose.msra.mxu0 0.0
  %522 = vmatprep.subr.mxu0 0.0
  %523 = vmatpush1.xpose.msra.mxu0 0.0
  %524 = vmatprep.subr.mxu0 0.0
  %525 = vmatpush1.xpose.msra.mxu0 0.0
  %526 = vmatprep.subr.mxu0 0.0
  %527 = vmatpush1.xpose.msra.mxu0 0.0
  %528 = vmatprep.subr.mxu0 0.0
  %529 = vmatpush1.xpose.msra.mxu0 0.0
  %530 = vmatprep.subr.mxu0 0.0
  %531 = vmatpush1.xpose.msra.mxu0 0.0
  %532 = vmatprep.subr.mxu0 0.0
  %533 = vmatpush1.xpose.msra.mxu0 0.0
  %534 = vmatprep.subr.mxu0 0.0
  %535 = vmatpush1.xpose.msra.mxu0 0.0
  %536 = vmatprep.subr.mxu0 0.0
  %537 = vmatpush1.xpose.msra.mxu0 0.0
  %538 = vmatprep.subr.mxu0 0.0
  %539 = vmatpush1.xpose.msra.mxu0 0.0
  %540 = vmatprep.subr.mxu0 0.0
  %541 = vmatpush1.xpose.msra.mxu0 0.0
  %542 = vmatprep.subr.mxu0 0.0
  %543 = vmatpush1.xpose.msra.mxu0 0.0
  %544 = vmatprep.subr.mxu0 0.0
  %545 = vmatpush1.xpose.msra.mxu0 0.0
  %546 = vmatprep.subr.mxu0 0.0
  %547 = vmatpush1.xpose.msra.mxu0 0.0
  %548 = vmatprep.mubr.f32.mxu0 0.0
  %549 = vmatmul.mubr.f32.gmra.mrb[0].mxu0 %v34
  %v550 = vpop.f32.mrb[0].mxu0
  %v551 = vadd.f32 0.0, %v550
  %v552 = vpop.f32.mrb[0].mxu0
  %553 = vmatprep.mubr.f32.mxu0 0.0
  %554 = vmatmul.mubr.f32.gmra.mrb[0].mxu0 %v35
  %v555 = vpop.f32.mrb[0].mxu0
  %v556 = vadd.f32 0.0, %v555
  %v557 = vpop.f32.mrb[0].mxu0
  %558 = vdwg.mxu0
  %v559 = vlaneseq
  %v560 = vshrl.u32 %v559, 7
  %v561 = vsub.s32 0, %v560
  %v562 = vrot.slane %v481, %v561
  %v563 = vadd.f32 %v409, %v562
  %v564 = vadd.f32 %v412, %v562
  %v565 = vmul.f32 %v551, 2.0
  %v566 = vmul.f32 %v556, 2.0
  %v567 = vsub.f32 %v563, %v565
  %v568 = vsub.f32 %v564, %v566
  %v569 = vmax.f32 %v567, 0.0
  %v570 = vmax.f32 %v568, 0.0
  %v571 = vrsqrt.pop %v569
  %v572 = vmul.f32 %v569, %v571
  %vm573 = vcmp.eq.f32.partialorder %v569, inf
  %v574 = vsel %vm573, %v569, %v572
  %vm575 = vcmp.eq.f32.partialorder %v569, 0.0
  %v576 = vand.u32 %v569, 2147483648
  %v577 = vsel %vm575, %v576, %v574
  %v578 = vrsqrt.pop %v570
  %v579 = vmul.f32 %v570, %v578
  %vm580 = vcmp.eq.f32.partialorder %v570, inf
  %v581 = vsel %vm580, %v570, %v579
  %vm582 = vcmp.eq.f32.partialorder %v570, 0.0
  %v583 = vand.u32 %v570, 2147483648
  %v584 = vsel %vm582, %v583, %v581
  %v585 = vsub.f32 0.0, %v577
  %v586 = vsub.f32 0.0, %v584
  %vm587 = vcmask 39936
  %588 = vst.msk [vmem:[%s3] sm:$0xff] %vm587, %v585
  %vm589 = vcmask 38912
  %590 = vst.msk [vmem:[%s3 + $0x8] sm:$0x7f] %vm589, %v586
  %591 = vst [vmem:[%s4] sm:$0x1f] %v403
  // Predicated region
  $region14: #{tpu_custom_call.1} parent=0 // pred_check
    _
  $region15: #{tpu_custom_call.1} parent=0 // pred_check_branch
    %593 = sbr.rel (0) target = $region17
  $region16: #{tpu_custom_call.1} parent=0 // pred_region
    _
  $region17: #{tpu_custom_call.1} parent=0 // pred_fallthru
    _
  // Predicated region
  $region18: #{tpu_custom_call.1} parent=0 // pred_check
    _
  $region19: #{tpu_custom_call.1} parent=0 // pred_check_branch
    %595 = sbr.rel (0) target = $region21
  $region20: #{tpu_custom_call.1} parent=0 // pred_region
    _
  $region21: #{tpu_custom_call.1} parent=0 // pred_fallthru
    _
  // Predicated region
  $region22: #{tpu_custom_call.1} parent=0 // pred_check
    _
  $region23: #{tpu_custom_call.1} parent=0 // pred_check_branch
    %597 = sbr.rel (0) target = $region25
  $region24: #{tpu_custom_call.1} parent=0 // pred_region
    _
  $region25: #{tpu_custom_call.1} parent=0 // pred_fallthru
    _
  // Predicated region
  $region26: #{tpu_custom_call.1} parent=0 // pred_check
    _
  $region27: #{tpu_custom_call.1} parent=0 // pred_check_branch
    %599 = sbr.rel (0) target = $region29
  $region28: #{tpu_custom_call.1} parent=0 // pred_region
    _
  $region29: #{tpu_custom_call.1} parent=0 // pred_fallthru
    _

</llo_original>
